<compile_context>
chip_gen: v6e
topology: v6e:2x2x1
jax: 0.10.0
libtpu: 0.0.40
codegen_flags: <defaults>
</compile_context>

<pallas_src>
import jax
import jax.numpy as jnp
from jax.experimental import pallas as pl
from jax.experimental.pallas import tpu as pltpu

EPS = 1e-5


def _make_kernel(m_valid: int):
    """Fused conv-GEMM + BatchNorm (batch stats) + sigmoid. m_valid = N*Do*Ho*Wo."""
    inv_m = 1.0 / float(m_valid)

    def kernel(w_ref, p_ref, g_ref, b_ref, o_ref):
        # Conv as one transposed GEMM on the MXU: (Cout, K) @ (K, M). M sits on
        # the lane axis, so the BN reduction is a short lane reduction and the
        # output stays lane-major.
        y = jnp.dot(w_ref[...], p_ref[...], preferred_element_type=jnp.float32)

        # BatchNorm batch statistics (biased variance) via sum / sum-of-squares.
        # No masks needed: inputs are unpadded, every column is valid.
        mean = jnp.sum(y, axis=-1, keepdims=True) * inv_m          # (Cout, 1)
        ex2 = jnp.sum(y * y, axis=-1, keepdims=True) * inv_m       # (Cout, 1)
        var = jnp.maximum(ex2 - mean * mean, 0.0)                  # clamp: cancellation guard

        # Fold the BN affine into a single per-channel scale/shift so the wide
        # tensor only sees one multiply + one add per vreg.
        scale = g_ref[...] * jax.lax.rsqrt(var + EPS)              # (Cout, 1)
        shift = b_ref[...] - mean * scale                          # (Cout, 1)
        z = y * scale + shift

        # sigmoid(z) = 0.5 * tanh(0.5*z) + 0.5 : one EUP push per vreg.
        o_ref[...] = 0.5 * jnp.tanh(0.5 * z) + 0.5

    return kernel


@jax.jit
def model_forward(x, conv_w, conv_b, bn_gamma, bn_beta):
    # conv_b is intentionally unused: under training-mode (batch-statistic)
    # BatchNorm the per-channel conv bias cancels exactly in (y - mean).
    # NOTE: this shortcut is invalid for eval-mode running statistics.
    del conv_b

    Cout, Cin, kd, kh, kw = conv_w.shape
    N, _, D, H, W = x.shape
    Do, Ho, Wo = D - kd + 1, H - kh + 1, W - kw + 1
    K = Cin * kd * kh * kw
    M = N * Do * Ho * Wo

    # im2col as ONE identity-kernel convolution. rhs[o] is a one-hot at the
    # row-major-unraveled (ci, dz, dy, dx) position o, so the patch-channel
    # ordering matches conv_w.reshape(Cout, K) by construction. HIGHEST
    # precision keeps the 0/1 "gather" exact in f32.
    eye_k = jnp.eye(K, dtype=x.dtype).reshape(K, Cin, kd, kh, kw)
    patches = jax.lax.conv_general_dilated(
        x, eye_k, window_strides=(1, 1, 1), padding="VALID",
        dimension_numbers=("NCDHW", "OIDHW", "NCDHW"),
        precision=jax.lax.Precision.HIGHEST)                      # (N, K, Do, Ho, Wo)
    # (K, M) with M flattened in (n, do, ho, wo) order.
    p_t = patches.transpose(1, 0, 2, 3, 4).reshape(K, M)

    w2 = conv_w.reshape(Cout, K)
    g2 = bn_gamma.reshape(Cout, 1)
    b2 = bn_beta.reshape(Cout, 1)

    # Raw, unpadded full-array VMEM blocks; Mosaic pads the layout internally.
    vspec = pl.BlockSpec(memory_space=pltpu.MemorySpace.VMEM)
    out_t = pl.pallas_call(
        _make_kernel(M),
        out_shape=jax.ShapeDtypeStruct((Cout, M), jnp.float32),
        in_specs=[vspec, vspec, vspec, vspec],
        out_specs=vspec,
    )(w2, p_t, g2, b2)

    # TODO(synk): for non-toy shapes, tile M with a two-pass BN (sum/sumsq pass
    # + normalize pass), feed the MXU bf16, cap the M tile for v7x's 64 MiB
    # VMEM, and give the grid a "parallel" axis so v7x's second TC is used.
    return out_t.reshape(Cout, N, Do, Ho, Wo).transpose(1, 0, 2, 3, 4)


def _reference(x, conv_w, conv_b, gamma, beta):
    """Pure-JAX reference: Conv3d + training-mode per-channel BN + sigmoid."""
    y = jax.lax.conv_general_dilated(
        x, conv_w, window_strides=(1, 1, 1), padding="VALID",
        dimension_numbers=("NCDHW", "OIDHW", "NCDHW"),
        precision=jax.lax.Precision.HIGHEST)
    y = y + conv_b.reshape(1, -1, 1, 1, 1)
    mean = jnp.mean(y, axis=(0, 2, 3, 4), keepdims=True)
    var = jnp.mean((y - mean) ** 2, axis=(0, 2, 3, 4), keepdims=True)
    z = (y - mean) * jax.lax.rsqrt(var + EPS) * gamma.reshape(1, -1, 1, 1, 1) \
        + beta.reshape(1, -1, 1, 1, 1)
    return jax.nn.sigmoid(z)


if __name__ == "__main__":
    key = jax.random.PRNGKey(0)
    k_x, k_w, k_b = jax.random.split(key, 3)

    N, Cin, D, H, W = 2, 3, 8, 8, 8
    Cout, kd, kh, kw = 5, 3, 3, 3

    x = jax.random.normal(k_x, (N, Cin, D, H, W), dtype=jnp.float32)

    # Deterministic "PyTorch-like" init: U(-1/sqrt(fan_in), 1/sqrt(fan_in)).
    fan_in = Cin * kd * kh * kw
    bound = 1.0 / (fan_in ** 0.5)
    conv_w = jax.random.uniform(k_w, (Cout, Cin, kd, kh, kw),
                                minval=-bound, maxval=bound, dtype=jnp.float32)
    conv_b = jax.random.uniform(k_b, (Cout,),
                                minval=-bound, maxval=bound, dtype=jnp.float32)
    bn_gamma = jnp.ones((Cout,), jnp.float32)
    bn_beta = jnp.zeros((Cout,), jnp.float32)

    out = model_forward(x, conv_w, conv_b, bn_gamma, bn_beta)
    jax.block_until_ready(out)
    assert out.shape == (N, Cout, D - kd + 1, H - kh + 1, W - kw + 1)

    # TODO(synk): strict PyTorch would raise here (BatchNorm1d rejects 5-D
    # input); we implement the intended per-channel batch norm over the
    # flattened spatial dims.
    ref = _reference(x, conv_w, conv_b, bn_gamma, bn_beta)
    max_err = float(jnp.max(jnp.abs(out - ref)))
    # Observed error is ~1e-6; 1e-3 leaves margin for MXU f32-pass rounding.
    assert max_err < 1e-3, f"max abs error vs reference too large: {max_err}"
    print("KERNEL_OK")
</pallas_src>

<mosaic_0001>
module attributes {stable_mosaic.version = 11 : i64} {
  func.func @kernel(%arg0: memref<5x81xf32, #tpu.memory_space<vmem>>, %arg1: memref<81x432xf32, #tpu.memory_space<vmem>>, %arg2: memref<5x1xf32, #tpu.memory_space<vmem>>, %arg3: memref<5x1xf32, #tpu.memory_space<vmem>>, %arg4: memref<5x432xf32, #tpu.memory_space<vmem>>) attributes {dimension_semantics = [], scalar_prefetch = 0 : i64, scratch_operands = 0 : i64, tpu.core_type = #tpu.core_type<tc>} {
    %c0 = arith.constant 0 : index
    %c0_0 = arith.constant 0 : index
    %0 = vector.load %arg0[%c0, %c0_0] : memref<5x81xf32, #tpu.memory_space<vmem>>, vector<5x81xf32>
    %c0_1 = arith.constant 0 : index
    %c0_2 = arith.constant 0 : index
    %1 = vector.load %arg1[%c0_1, %c0_2] : memref<81x432xf32, #tpu.memory_space<vmem>>, vector<81x432xf32>
    %cst = arith.constant dense<0.000000e+00> : vector<5x432xf32>
    %2 = tpu.matmul %0, %1, %cst {dimension_numbers = #tpu.dot_dimension_numbers<[1], [0], [0], [1], [0, 0, 1, 1], [], []>} : vector<5x81xf32>, vector<81x432xf32>, vector<5x432xf32> -> vector<5x432xf32>
    %cst_3 = arith.constant dense<0.000000e+00> : vector<5xf32>
    %3 = vector.multi_reduction <add>, %2, %cst_3 [1] : vector<5x432xf32> to vector<5xf32>
    %4 = vector.shape_cast %3 : vector<5xf32> to vector<5x1xf32>
    %cst_4 = arith.constant 0.00231481483 : f32
    %5 = vector.broadcast %cst_4 : f32 to vector<5x1xf32>
    %6 = arith.mulf %4, %5 : vector<5x1xf32>
    %7 = arith.mulf %2, %2 : vector<5x432xf32>
    %cst_5 = arith.constant dense<0.000000e+00> : vector<5xf32>
    %8 = vector.multi_reduction <add>, %7, %cst_5 [1] : vector<5x432xf32> to vector<5xf32>
    %9 = vector.shape_cast %8 : vector<5xf32> to vector<5x1xf32>
    %cst_6 = arith.constant 0.00231481483 : f32
    %10 = vector.broadcast %cst_6 : f32 to vector<5x1xf32>
    %11 = arith.mulf %9, %10 : vector<5x1xf32>
    %12 = arith.mulf %6, %6 : vector<5x1xf32>
    %13 = arith.subf %11, %12 : vector<5x1xf32>
    %cst_7 = arith.constant 0.000000e+00 : f32
    %14 = vector.broadcast %cst_7 : f32 to vector<5x1xf32>
    %15 = arith.maximumf %13, %14 : vector<5x1xf32>
    %c0_8 = arith.constant 0 : index
    %c0_9 = arith.constant 0 : index
    %16 = vector.load %arg2[%c0_8, %c0_9] : memref<5x1xf32, #tpu.memory_space<vmem>>, vector<5x1xf32>
    %cst_10 = arith.constant 9.99999974E-6 : f32
    %17 = vector.broadcast %cst_10 : f32 to vector<5x1xf32>
    %18 = arith.addf %15, %17 : vector<5x1xf32>
    %19 = math.rsqrt %18 : vector<5x1xf32>
    %20 = arith.mulf %16, %19 : vector<5x1xf32>
    %c0_11 = arith.constant 0 : index
    %c0_12 = arith.constant 0 : index
    %21 = vector.load %arg3[%c0_11, %c0_12] : memref<5x1xf32, #tpu.memory_space<vmem>>, vector<5x1xf32>
    %22 = arith.mulf %6, %20 : vector<5x1xf32>
    %23 = arith.subf %21, %22 : vector<5x1xf32>
    %24 = vector.broadcast %20 : vector<5x1xf32> to vector<5x432xf32>
    %25 = arith.mulf %2, %24 : vector<5x432xf32>
    %26 = vector.broadcast %23 : vector<5x1xf32> to vector<5x432xf32>
    %27 = arith.addf %25, %26 : vector<5x432xf32>
    %cst_13 = arith.constant 5.000000e-01 : f32
    %28 = vector.broadcast %cst_13 : f32 to vector<5x432xf32>
    %29 = arith.mulf %28, %27 : vector<5x432xf32>
    %30 = math.tanh %29 : vector<5x432xf32>
    %cst_14 = arith.constant 5.000000e-01 : f32
    %31 = vector.broadcast %cst_14 : f32 to vector<5x432xf32>
    %32 = arith.mulf %31, %30 : vector<5x432xf32>
    %cst_15 = arith.constant 5.000000e-01 : f32
    %33 = vector.broadcast %cst_15 : f32 to vector<5x432xf32>
    %34 = arith.addf %32, %33 : vector<5x432xf32>
    %c0_16 = arith.constant 0 : index
    %c0_17 = arith.constant 0 : index
    %35 = vector.load %arg4[%c0_16, %c0_17] : memref<5x432xf32, #tpu.memory_space<vmem>>, vector<5x432xf32>
    tpu.vector_store %arg4[%c0_16, %c0_17], %34 {strides = array<i32>} : memref<5x432xf32, #tpu.memory_space<vmem>>, vector<5x432xf32>,
    return
  }
}

</mosaic_0001>

<llo_original>
// kernel: model_forward.1
$region0: #{model_forward.1}
  #allocation0 [shape = 'u32[]', space=smem, size = 0x4, offset = 0x4, fixed_abs, tag = 'smem constant byte address 0x4 - core index']
  #allocation1 [shape = 'u32[144,128]{1,0:T(1,128)}', space=vmem, size = 0x12000, scoped, tag = 'internal scratch']
  %s0 = inlined_call_operand.vmem [shape: f32[5,81], index: 0, kind: input, shape index: {}]
  %s1 = inlined_call_operand.vmem [shape: f32[81,432], index: 1, kind: input, shape index: {}]
  %s2 = inlined_call_operand.vmem [shape: f32[5,1], index: 2, kind: input, shape index: {}]
  %s3 = inlined_call_operand.vmem [shape: f32[5,1], index: 3, kind: input, shape index: {}]
  %s4 = inlined_call_operand.vmem [shape: f32[5,432], index: 4, kind: output, shape index: {}]
  %s5 = sld [smem:[#allocation0]]
  $region26: #{model_forward.1} parent=0
    _
  %s7 = ssub.s32 1, %s5
  %s8 = scalar_select 0, %s7, %s5
  // Predicated region
  $region2: #{model_forward.1} parent=0 // pred_check
    _
  $region3: #{model_forward.1} parent=0 // pred_check_branch
    %10 = sbr.rel (0) target = $region5
  $region4: #{model_forward.1} parent=0 // pred_region
    _
  $region5: #{model_forward.1} parent=0 // pred_fallthru
    _
  // Predicated region
  $region6: #{model_forward.1} parent=0 // pred_check
    _
  $region7: #{model_forward.1} parent=0 // pred_check_branch
    %12 = sbr.rel (0) target = $region9
  $region8: #{model_forward.1} parent=0 // pred_region
    _
  $region9: #{model_forward.1} parent=0 // pred_fallthru
    _
  // Predicated region
  $region10: #{model_forward.1} parent=0 // pred_check
    _
  $region11: #{model_forward.1} parent=0 // pred_check_branch
    %14 = sbr.rel (0) target = $region13
  $region12: #{model_forward.1} parent=0 // pred_region
    _
  $region13: #{model_forward.1} parent=0 // pred_fallthru
    _
  // Predicated region
  $region14: #{model_forward.1} parent=0 // pred_check
    _
  $region15: #{model_forward.1} parent=0 // pred_check_branch
    %16 = sbr.rel (0) target = $region17
  $region16: #{model_forward.1} parent=0 // pred_region
    _
  $region17: #{model_forward.1} parent=0 // pred_fallthru
    _
  %v17 = vld [vmem:[%s0] sm:$0x1f]
  %v18 = vld [vmem:[%s1] sm:$0xff]
  %v19 = vld [vmem:[%s1 + $0x8] sm:$0xff]
  %v20 = vld [vmem:[%s1 + $0x10] sm:$0xff]
  %v21 = vld [vmem:[%s1 + $0x18] sm:$0xff]
  %v22 = vld [vmem:[%s1 + $0x20] sm:$0xff]
  %v23 = vld [vmem:[%s1 + $0x28] sm:$0xff]
  %v24 = vld [vmem:[%s1 + $0x30] sm:$0xff]
  %v25 = vld [vmem:[%s1 + $0x38] sm:$0xff]
  %v26 = vld [vmem:[%s1 + $0x40] sm:$0xff]
  %v27 = vld [vmem:[%s1 + $0x48] sm:$0xff]
  %v28 = vld [vmem:[%s1 + $0x50] sm:$0xff]
  %v29 = vld [vmem:[%s1 + $0x58] sm:$0xff]
  %v30 = vld [vmem:[%s1 + $0x60] sm:$0xff]
  %v31 = vld [vmem:[%s1 + $0x68] sm:$0xff]
  %v32 = vld [vmem:[%s1 + $0x70] sm:$0xff]
  %v33 = vld [vmem:[%s1 + $0x78] sm:$0xff]
  %v34 = vld [vmem:[%s1 + $0x80] sm:$0xff]
  %v35 = vld [vmem:[%s1 + $0x88] sm:$0xff]
  %v36 = vld [vmem:[%s1 + $0x90] sm:$0xff]
  %v37 = vld [vmem:[%s1 + $0x98] sm:$0xff]
  %v38 = vld [vmem:[%s1 + $0xa0] sm:$0xff]
  %v39 = vld [vmem:[%s1 + $0xa8] sm:$0xff]
  %v40 = vld [vmem:[%s1 + $0xb0] sm:$0xff]
  %v41 = vld [vmem:[%s1 + $0xb8] sm:$0xff]
  %v42 = vld [vmem:[%s1 + $0xc0] sm:$0xff]
  %v43 = vld [vmem:[%s1 + $0xc8] sm:$0xff]
  %v44 = vld [vmem:[%s1 + $0xd0] sm:$0xff]
  %v45 = vld [vmem:[%s1 + $0xd8] sm:$0xff]
  %v46 = vld [vmem:[%s1 + $0xe0] sm:$0xff]
  %v47 = vld [vmem:[%s1 + $0xe8] sm:$0xff]
  %v48 = vld [vmem:[%s1 + $0xf0] sm:$0xff]
  %v49 = vld [vmem:[%s1 + $0xf8] sm:$0xff]
  %v50 = vld [vmem:[%s1 + $0x100] sm:$0xff]
  %v51 = vld [vmem:[%s1 + $0x108] sm:$0xff]
  %v52 = vld [vmem:[%s1 + $0x110] sm:$0xff]
  %v53 = vld [vmem:[%s1 + $0x118] sm:$0xff]
  %v54 = vld [vmem:[%s1 + $0x120] sm:$0xff]
  %v55 = vld [vmem:[%s1 + $0x128] sm:$0xff]
  %v56 = vld [vmem:[%s1 + $0x130] sm:$0xff]
  %v57 = vld [vmem:[%s1 + $0x138] sm:$0xff]
  %v58 = vld [vmem:[%s1 + $0x140] sm:$0x1]
  %v59 = vld [vmem:[%s1 + $0x148] sm:$0x1]
  %v60 = vld [vmem:[%s1 + $0x150] sm:$0x1]
  %v61 = vld [vmem:[%s1 + $0x158] sm:$0x1]
  %vm62 = vcmask 662528
  %v64 = vsel %vm62, %v17, 0
  %vm66 = vcmask 1040384
  %v68 = vsel %vm66, %v58, 0
  %v71 = vsel %vm66, %v59, 0
  %v74 = vsel %vm66, %v60, 0
  %v77 = vsel %vm66, %v61, 0
  %79 = vmatprep.subr.mxu0 0.0
  %80 = vmatpush1.msra.mxu0 0.0
  %81 = vmatprep.subr.mxu0 0.0
  %82 = vmatpush1.msra.mxu0 0.0
  %83 = vmatprep.subr.mxu0 0.0
  %84 = vmatpush1.msra.mxu0 0.0
  %85 = vmatprep.subr.mxu0 0.0
  %86 = vmatpush1.msra.mxu0 0.0
  %87 = vmatprep.subr.mxu0 0.0
  %88 = vmatpush1.msra.mxu0 0.0
  %89 = vmatprep.subr.mxu0 %v71
  %90 = vmatpush1.msra.mxu0 %v68
  %91 = vmatprep.subr.mxu0 %v55
  %92 = vmatpush1.msra.mxu0 %v54
  %93 = vmatprep.subr.mxu0 %v51
  %94 = vmatpush1.msra.mxu0 %v50
  %95 = vmatprep.subr.mxu0 %v47
  %96 = vmatpush1.msra.mxu0 %v46
  %97 = vmatprep.subr.mxu0 %v43
  %98 = vmatpush1.msra.mxu0 %v42
  %99 = vmatprep.subr.mxu0 %v39
  %100 = vmatpush1.msra.mxu0 %v38
  %101 = vmatprep.subr.mxu0 %v35
  %102 = vmatpush1.msra.mxu0 %v34
  %103 = vmatprep.subr.mxu0 %v31
  %104 = vmatpush1.msra.mxu0 %v30
  %105 = vmatprep.subr.mxu0 %v27
  %106 = vmatpush1.msra.mxu0 %v26
  %107 = vmatprep.subr.mxu0 %v23
  %108 = vmatpush1.msra.mxu0 %v22
  %109 = vmatprep.subr.mxu0 %v19
  %110 = vmatpush1.msra.mxu0 %v18
  %111 = vmatprep.subr.mxu0 0.0
  %112 = vmatpush2.msra.mxu0 0.0
  %113 = vmatprep.subr.mxu0 0.0
  %114 = vmatpush2.msra.mxu0 0.0
  %115 = vmatprep.subr.mxu0 0.0
  %116 = vmatpush2.msra.mxu0 0.0
  %117 = vmatprep.subr.mxu0 0.0
  %118 = vmatpush2.msra.mxu0 0.0
  %119 = vmatprep.subr.mxu0 0.0
  %120 = vmatpush2.msra.mxu0 0.0
  %121 = vmatprep.subr.mxu0 0.0
  %122 = vmatpush2.msra.mxu0 0.0
  %123 = vmatprep.subr.mxu0 0.0
  %124 = vmatpush2.msra.mxu0 0.0
  %125 = vmatprep.subr.mxu0 0.0
  %126 = vmatpush2.msra.mxu0 0.0
  %127 = vmatprep.subr.mxu0 0.0
  %128 = vmatpush2.msra.mxu0 0.0
  %129 = vmatprep.subr.mxu0 0.0
  %130 = vmatpush2.msra.mxu0 0.0
  %131 = vmatprep.subr.mxu0 0.0
  %132 = vmatpush2.msra.mxu0 0.0
  %133 = vmatprep.subr.mxu0 0.0
  %134 = vmatpush2.msra.mxu0 0.0
  %135 = vmatprep.subr.mxu0 0.0
  %136 = vmatpush2.msra.mxu0 0.0
  %137 = vmatprep.subr.mxu0 0.0
  %138 = vmatpush2.msra.mxu0 0.0
  %139 = vmatprep.subr.mxu0 0.0
  %140 = vmatpush2.msra.mxu0 0.0
  %141 = vmatprep.subr.mxu0 0.0
  %142 = vmatpush2.msra.mxu0 0.0
  %143 = vmatprep.mubr.f32.mxu0 0.0
  %144 = vmatmul.mubr.f32.gmra.mxu0 %v64
  %v145 = vpop.f32.mrf.mxu0
  %v146 = vadd.f32 0.0, %v145
  %v147 = vpop.f32.mrf.mxu0
  %v148 = vadd.f32 0.0, %v147
  %149 = vdwg.mxu0
  %150 = vmatprep.subr.mxu0 0.0
  %151 = vmatpush1.msra.mxu0 0.0
  %152 = vmatprep.subr.mxu0 0.0
  %153 = vmatpush1.msra.mxu0 0.0
  %154 = vmatprep.subr.mxu0 0.0
  %155 = vmatpush1.msra.mxu0 0.0
  %156 = vmatprep.subr.mxu0 0.0
  %157 = vmatpush1.msra.mxu0 0.0
  %158 = vmatprep.subr.mxu0 0.0
  %159 = vmatpush1.msra.mxu0 0.0
  %160 = vmatprep.subr.mxu0 %v77
  %161 = vmatpush1.msra.mxu0 %v74
  %162 = vmatprep.subr.mxu0 %v57
  %163 = vmatpush1.msra.mxu0 %v56
  %164 = vmatprep.subr.mxu0 %v53
  %165 = vmatpush1.msra.mxu0 %v52
  %166 = vmatprep.subr.mxu0 %v49
  %167 = vmatpush1.msra.mxu0 %v48
  %168 = vmatprep.subr.mxu0 %v45
  %169 = vmatpush1.msra.mxu0 %v44
  %170 = vmatprep.subr.mxu0 %v41
  %171 = vmatpush1.msra.mxu0 %v40
  %172 = vmatprep.subr.mxu0 %v37
  %173 = vmatpush1.msra.mxu0 %v36
  %174 = vmatprep.subr.mxu0 %v33
  %175 = vmatpush1.msra.mxu0 %v32
  %176 = vmatprep.subr.mxu0 %v29
  %177 = vmatpush1.msra.mxu0 %v28
  %178 = vmatprep.subr.mxu0 %v25
  %179 = vmatpush1.msra.mxu0 %v24
  %180 = vmatprep.subr.mxu0 %v21
  %181 = vmatpush1.msra.mxu0 %v20
  %182 = vmatprep.subr.mxu0 0.0
  %183 = vmatpush2.msra.mxu0 0.0
  %184 = vmatprep.subr.mxu0 0.0
  %185 = vmatpush2.msra.mxu0 0.0
  %186 = vmatprep.subr.mxu0 0.0
  %187 = vmatpush2.msra.mxu0 0.0
  %188 = vmatprep.subr.mxu0 0.0
  %189 = vmatpush2.msra.mxu0 0.0
  %190 = vmatprep.subr.mxu0 0.0
  %191 = vmatpush2.msra.mxu0 0.0
  %192 = vmatprep.subr.mxu0 0.0
  %193 = vmatpush2.msra.mxu0 0.0
  %194 = vmatprep.subr.mxu0 0.0
  %195 = vmatpush2.msra.mxu0 0.0
  %196 = vmatprep.subr.mxu0 0.0
  %197 = vmatpush2.msra.mxu0 0.0
  %198 = vmatprep.subr.mxu0 0.0
  %199 = vmatpush2.msra.mxu0 0.0
  %200 = vmatprep.subr.mxu0 0.0
  %201 = vmatpush2.msra.mxu0 0.0
  %202 = vmatprep.subr.mxu0 0.0
  %203 = vmatpush2.msra.mxu0 0.0
  %204 = vmatprep.subr.mxu0 0.0
  %205 = vmatpush2.msra.mxu0 0.0
  %206 = vmatprep.subr.mxu0 0.0
  %207 = vmatpush2.msra.mxu0 0.0
  %208 = vmatprep.subr.mxu0 0.0
  %209 = vmatpush2.msra.mxu0 0.0
  %210 = vmatprep.subr.mxu0 0.0
  %211 = vmatpush2.msra.mxu0 0.0
  %212 = vmatprep.subr.mxu0 0.0
  %213 = vmatpush2.msra.mxu0 0.0
  %214 = vmatprep.mubr.f32.mxu0 0.0
  %215 = vmatmul.mubr.f32.gmra.mxu0 %v64
  %v216 = vpop.f32.mrf.mxu0
  %v217 = vadd.f32 0.0, %v216
  %v218 = vpop.f32.mrf.mxu0
  %v219 = vadd.f32 0.0, %v218
  %220 = vdwg.mxu0
  %vm221 = vcmask 1044480
  %v222 = vsel %vm221, %v146, 0.0
  %v223 = vsel %vm221, %v148, 0.0
  %v224 = vadd.f32 %v222, %v223
  %v225 = vsel %vm221, %v217, 0.0
  %v226 = vadd.f32 %v224, %v225
  %vm227 = vcmask 389120
  %v228 = vsel %vm227, %v219, 0.0
  %v229 = vadd.f32 %v226, %v228
  %230 = vadd.xlane.f32.xlu0 %v229
  %v231 = vpop.xlane.xlu0 %230
  %v232 = vmul.f32 %v231, 0.0023148148
  %v233 = vmul.f32 %v146, %v146
  %v234 = vmul.f32 %v148, %v148
  %v235 = vmul.f32 %v217, %v217
  %v236 = vmul.f32 %v219, %v219
  %v237 = vsel %vm221, %v233, 0.0
  %v238 = vsel %vm221, %v234, 0.0
  %v239 = vadd.f32 %v237, %v238
  %v240 = vsel %vm221, %v235, 0.0
  %v241 = vadd.f32 %v239, %v240
  %v242 = vsel %vm227, %v236, 0.0
  %v243 = vadd.f32 %v241, %v242
  %244 = vadd.xlane.f32.xlu0 %v243
  %v245 = vpop.xlane.xlu0 %244
  %v246 = vmul.f32 %v245, 0.0023148148
  %v247 = vmul.f32 %v232, %v232
  %v248 = vsub.f32 %v246, %v247
  %v249 = vmax.f32 %v248, 0.0
  %v250 = vld [vmem:[%s2] sm:$0x1f]
  %v251 = vadd.f32 %v249, 1e-05
  %v252 = vrsqrt.pop %v251
  %v253 = vmul.f32 %v250, %v252
  %v254 = vld [vmem:[%s3] sm:$0x1f]
  %v255 = vmul.f32 %v232, %v253
  %v256 = vsub.f32 %v254, %v255
  %258 = vset.pattern.permute.xlu0 0
  %259 = vperm.xlu0 %258, %v253
  %v260 = vpop.permute.xlu0 %259
  %v262 = vmul.f32 %v146, %v260
  %v263 = vmul.f32 %v148, %v260
  %v264 = vmul.f32 %v217, %v260
  %v265 = vmul.f32 %v219, %v260
  %267 = vset.pattern.permute.xlu0 0
  %268 = vperm.xlu0 %267, %v256
  %v269 = vpop.permute.xlu0 %268
  %v271 = vadd.f32 %v262, %v269
  %v272 = vadd.f32 %v263, %v269
  %v273 = vadd.f32 %v264, %v269
  %v274 = vadd.f32 %v265, %v269
  %v275 = vmul.f32 %v271, 0.5
  %v276 = vmul.f32 %v272, 0.5
  %v277 = vmul.f32 %v273, 0.5
  %v278 = vmul.f32 %v274, 0.5
  %v279 = vtanh.pop %v275
  %v280 = vtanh.pop %v276
  %v281 = vtanh.pop %v277
  %v282 = vtanh.pop %v278
  %v283 = vmul.f32 %v279, 0.5
  %v284 = vmul.f32 %v280, 0.5
  %v285 = vmul.f32 %v281, 0.5
  %v286 = vmul.f32 %v282, 0.5
  %v287 = vadd.f32 %v283, 0.5
  %v288 = vadd.f32 %v284, 0.5
  %v289 = vadd.f32 %v285, 0.5
  %v290 = vadd.f32 %v286, 0.5
  %291 = vst [vmem:[%s4] sm:$0x1f] %v287
  %292 = vst [vmem:[%s4 + $0x8] sm:$0x1f] %v288
  %293 = vst [vmem:[%s4 + $0x10] sm:$0x1f] %v289
  %294 = vst.msk [vmem:[%s4 + $0x18] sm:$0x1f] %vm227, %v290
  // Predicated region
  $region18: #{model_forward.1} parent=0 // pred_check
    _
  $region19: #{model_forward.1} parent=0 // pred_check_branch
    %296 = sbr.rel (0) target = $region21
  $region20: #{model_forward.1} parent=0 // pred_region
    _
  $region21: #{model_forward.1} parent=0 // pred_fallthru
    _
  // Predicated region
  $region22: #{model_forward.1} parent=0 // pred_check
    _
  $region23: #{model_forward.1} parent=0 // pred_check_branch
    %298 = sbr.rel (0) target = $region25
  $region24: #{model_forward.1} parent=0 // pred_region
    _
  $region25: #{model_forward.1} parent=0 // pred_fallthru
    _

</llo_original>
